<compile_context>
chip_gen: v6e
topology: v6e:2x2x1
jax: 0.10.0
libtpu: 0.0.40
codegen_flags: <defaults>
</compile_context>

<pallas_src>
import functools

import jax
import jax.numpy as jnp
from jax.experimental import pallas as pl
from jax.experimental.pallas import tpu as pltpu

REPARAM_NOISE = 1e-6
_F32_MIN = float(jnp.finfo(jnp.float32).min)
_F32_MAX = float(jnp.finfo(jnp.float32).max)


# ----------------------------------------------------------------------------
# Pallas kernel: fused MLP  (fc1 -> relu -> fc2 -> relu -> fused [mu|sigma] head)
# ----------------------------------------------------------------------------
def actor_fwd_kernel(x_ref, w1_ref, b1_ref, w2_ref, b2_ref,
                     wh_ref, bh_ref, lo_ref, hi_ref, out_ref):
    # fc1 + ReLU   (K = input_dim)
    h1 = jnp.dot(x_ref[...], w1_ref[...], preferred_element_type=jnp.float32)
    h1 = jnp.maximum(h1 + b1_ref[...], 0.0)

    # fc2 + ReLU   (K = fc1_dims)
    h2 = jnp.dot(h1, w2_ref[...], preferred_element_type=jnp.float32)
    h2 = jnp.maximum(h2 + b2_ref[...], 0.0)

    # Fused heads: lanes [0, n_actions) = mu, lanes [n_actions, 2*n_actions) = sigma,
    # remaining lanes are zero padding (sliced off in the wrapper).
    y = jnp.dot(h2, wh_ref[...], preferred_element_type=jnp.float32) + bh_ref[...]

    # Per-lane clamp vectors: mu lanes get (f32_min, f32_max) -> pass-through,
    # sigma lanes get (1e-6, 1.0).  Two VPU ops, lane-dense unmasked store.
    out_ref[...] = jnp.minimum(jnp.maximum(y, lo_ref[...]), hi_ref[...])

    # TODO(synk): optionally fuse tanh-squashed sampling (rsample + log_prob
    # correction from sample_normal) here using pltpu.prng_seed / prng_random_bits;
    # the EUP (exp/tanh) slot is idle in this kernel and would amortize the
    # per-call weight DMA + launch overhead for tiny RL inference batches.


# ----------------------------------------------------------------------------
# Wrapper
# ----------------------------------------------------------------------------
def _round_up(x, m):
    return ((x + m - 1) // m) * m


def _choose_tb(B):
    """Batch tile: one grid step for small/medium batches; ~2 tiles (<=1024 rows)
    for large batches so v7x's two TensorCores both run."""
    b8 = _round_up(max(B, 8), 8)
    if b8 <= 512:
        return b8
    return min(1024, _round_up((b8 + 1) // 2, 8))


def pack_params(params):
    """One-time prep: fuse mu/sigma head weights, pad to a full 128-lane tile,
    and build the per-lane clamp vectors."""
    n_actions = params["w_mu"].shape[1]
    head_out = 2 * n_actions
    head_pad = max(128, _round_up(head_out, 128))  # exactly 128 for n_actions <= 64

    w_head = jnp.pad(jnp.concatenate([params["w_mu"], params["w_sigma"]], axis=1),
                     ((0, 0), (0, head_pad - head_out)))
    b_head = jnp.pad(jnp.concatenate([params["b_mu"], params["b_sigma"]], axis=1),
                     ((0, 0), (0, head_pad - head_out)))

    pad = head_pad - head_out
    lo = jnp.concatenate([
        jnp.full((1, n_actions), _F32_MIN, jnp.float32),      # mu: pass-through
        jnp.full((1, n_actions), REPARAM_NOISE, jnp.float32),  # sigma: min 1e-6
        jnp.full((1, pad), _F32_MIN, jnp.float32)], axis=1)     # padding lanes
    hi = jnp.concatenate([
        jnp.full((1, n_actions), _F32_MAX, jnp.float32),
        jnp.full((1, n_actions), 1.0, jnp.float32),             # sigma: max 1.0
        jnp.full((1, pad), _F32_MAX, jnp.float32)], axis=1)

    packed = {"w1": params["w1"], "b1": params["b1"],
              "w2": params["w2"], "b2": params["b2"],
              "w_head": w_head, "b_head": b_head,
              "lo": lo, "hi": hi}
    return packed, n_actions


@functools.partial(jax.jit, static_argnames=("n_actions", "tb"))
def actor_forward(state, packed, *, n_actions, tb=None):
    """state: [B, input_dim] float32. Returns (mu, sigma), each [B, n_actions]."""
    B, D = state.shape
    FC1 = packed["w1"].shape[1]
    FC2 = packed["w2"].shape[1]
    HEAD_PAD = packed["w_head"].shape[1]

    tb = _choose_tb(B) if tb is None else _round_up(max(tb, 8), 8)
    B_pad = _round_up(max(B, 8), tb)
    x = state if B_pad == B else jnp.pad(state, ((0, B_pad - B), (0, 0)))

    grid = (B_pad // tb,)
    # Weights / biases / clamp vectors: constant block index across the batch grid
    # -> DMA'd once, resident in VMEM for all batch tiles (~0.55 MiB total).
    const = lambda shape: pl.BlockSpec(shape, lambda i: (0, 0))

    out = pl.pallas_call(
        actor_fwd_kernel,
        out_shape=jax.ShapeDtypeStruct((B_pad, HEAD_PAD), jnp.float32),
        grid_spec=pltpu.PrefetchScalarGridSpec(
            num_scalar_prefetch=0,
            grid=grid,
            in_specs=[
                pl.BlockSpec((tb, D), lambda i: (i, 0)),   # state tile streams
                const((D, FC1)), const((1, FC1)),
                const((FC1, FC2)), const((1, FC2)),
                const((FC2, HEAD_PAD)), const((1, HEAD_PAD)),
                const((1, HEAD_PAD)), const((1, HEAD_PAD)),  # clamp lo / hi
            ],
            out_specs=pl.BlockSpec((tb, HEAD_PAD), lambda i: (i, 0)),
        ),
        compiler_params=pltpu.CompilerParams(
            dimension_semantics=("parallel",)),   # v7x: both TCs split the batch
    )(x, packed["w1"], packed["b1"], packed["w2"], packed["b2"],
      packed["w_head"], packed["b_head"], packed["lo"], packed["hi"])

    mu = out[:B, :n_actions]
    sigma = out[:B, n_actions:2 * n_actions]
    return mu, sigma


# ----------------------------------------------------------------------------
# Deterministic parameter init (mimics torch.nn.Linear default:
# U(-1/sqrt(fan_in), 1/sqrt(fan_in)) for both weight and bias). Weights [in, out].
# ----------------------------------------------------------------------------
def init_params(key, input_dim, fc1_dims, fc2_dims, n_actions):
    def linear(k, fan_in, fan_out):
        kw, kb = jax.random.split(k)
        bound = 1.0 / jnp.sqrt(jnp.float32(fan_in))
        w = jax.random.uniform(kw, (fan_in, fan_out), jnp.float32, -bound, bound)
        b = jax.random.uniform(kb, (1, fan_out), jnp.float32, -bound, bound)
        return w, b

    k1, k2, k3, k4 = jax.random.split(key, 4)
    w1, b1 = linear(k1, input_dim, fc1_dims)
    w2, b2 = linear(k2, fc1_dims, fc2_dims)
    w_mu, b_mu = linear(k3, fc2_dims, n_actions)
    w_sg, b_sg = linear(k4, fc2_dims, n_actions)
    return {"w1": w1, "b1": b1, "w2": w2, "b2": b2,
            "w_mu": w_mu, "b_mu": b_mu, "w_sigma": w_sg, "b_sigma": b_sg}


# Pure-JAX reference (matches the PyTorch forward).
def actor_forward_ref(state, p):
    h1 = jnp.maximum(state @ p["w1"] + p["b1"], 0.0)
    h2 = jnp.maximum(h1 @ p["w2"] + p["b2"], 0.0)
    mu = h2 @ p["w_mu"] + p["b_mu"]
    sigma = jnp.clip(h2 @ p["w_sigma"] + p["b_sigma"], REPARAM_NOISE, 1.0)
    return mu, sigma


if __name__ == "__main__":
    # Shapes consistent with the module: input_dims=(8,), fc dims=256, n_actions=2.
    B, INPUT_DIM, FC1, FC2, N_ACTIONS = 2, 8, 256, 256, 2

    key = jax.random.PRNGKey(0)
    k_params, k_state, k_state2, k_state3 = jax.random.split(key, 4)

    params = init_params(k_params, INPUT_DIM, FC1, FC2, N_ACTIONS)
    packed, n_actions = pack_params(params)

    # --- small batch (B=2): single grid step, tb = 8 (padded batch) ---
    state = jax.random.normal(k_state, (B, INPUT_DIM), jnp.float32)
    mu, sigma = actor_forward(state, packed, n_actions=n_actions)
    jax.block_until_ready((mu, sigma))

    mu_ref, sigma_ref = actor_forward_ref(state, params)
    assert mu.shape == (B, N_ACTIONS) and sigma.shape == (B, N_ACTIONS)
    assert jnp.allclose(mu, mu_ref, atol=1e-4, rtol=1e-4)
    assert jnp.allclose(sigma, sigma_ref, atol=1e-4, rtol=1e-4)
    assert bool(jnp.all(sigma >= REPARAM_NOISE)) and bool(jnp.all(sigma <= 1.0))

    # --- medium batch (B=32): default tile = whole batch -> grid=(1,) ---
    B2 = 32
    state2 = jax.random.normal(k_state2, (B2, INPUT_DIM), jnp.float32)
    mu2, sigma2 = actor_forward(state2, packed, n_actions=n_actions)
    jax.block_until_ready((mu2, sigma2))
    mu2_ref, sigma2_ref = actor_forward_ref(state2, params)
    assert jnp.allclose(mu2, mu2_ref, atol=1e-4, rtol=1e-4)
    assert jnp.allclose(sigma2, sigma2_ref, atol=1e-4, rtol=1e-4)

    # --- large batch (B=600): exercises the 2-tile (v7x dual-TC) + padding path ---
    B3 = 600
    state3 = jax.random.normal(k_state3, (B3, INPUT_DIM), jnp.float32)
    mu3, sigma3 = actor_forward(state3, packed, n_actions=n_actions)
    jax.block_until_ready((mu3, sigma3))
    mu3_ref, sigma3_ref = actor_forward_ref(state3, params)
    assert mu3.shape == (B3, N_ACTIONS) and sigma3.shape == (B3, N_ACTIONS)
    assert jnp.allclose(mu3, mu3_ref, atol=1e-4, rtol=1e-4)
    assert jnp.allclose(sigma3, sigma3_ref, atol=1e-4, rtol=1e-4)

    print("KERNEL_OK")
</pallas_src>

<mosaic_0001>
module attributes {stable_mosaic.version = 11 : i64} {
  func.func @actor_fwd_kernel(%arg0: i32, %arg1: memref<8x8xf32, #tpu.memory_space<vmem>>, %arg2: memref<8x256xf32, #tpu.memory_space<vmem>>, %arg3: memref<1x256xf32, #tpu.memory_space<vmem>>, %arg4: memref<256x256xf32, #tpu.memory_space<vmem>>, %arg5: memref<1x256xf32, #tpu.memory_space<vmem>>, %arg6: memref<256x128xf32, #tpu.memory_space<vmem>>, %arg7: memref<1x128xf32, #tpu.memory_space<vmem>>, %arg8: memref<1x128xf32, #tpu.memory_space<vmem>>, %arg9: memref<1x128xf32, #tpu.memory_space<vmem>>, %arg10: memref<8x128xf32, #tpu.memory_space<vmem>>) attributes {dimension_semantics = [#tpu.dimension_semantics<parallel>], iteration_bounds = array<i64: 1>, scalar_prefetch = 0 : i64, scratch_operands = 0 : i64, tpu.core_type = #tpu.core_type<tc>, window_params = [{transform_indices = @transform_0, window_bounds = array<i64: 8, 8>}, {pipeline_mode = #tpu.pipeline_mode<synchronous>, transform_indices = @transform_1, window_bounds = array<i64: 8, 256>}, {pipeline_mode = #tpu.pipeline_mode<synchronous>, transform_indices = @transform_2, window_bounds = array<i64: 1, 256>}, {pipeline_mode = #tpu.pipeline_mode<synchronous>, transform_indices = @transform_3, window_bounds = array<i64: 256, 256>}, {pipeline_mode = #tpu.pipeline_mode<synchronous>, transform_indices = @transform_4, window_bounds = array<i64: 1, 256>}, {pipeline_mode = #tpu.pipeline_mode<synchronous>, transform_indices = @transform_5, window_bounds = array<i64: 256, 128>}, {pipeline_mode = #tpu.pipeline_mode<synchronous>, transform_indices = @transform_6, window_bounds = array<i64: 1, 128>}, {pipeline_mode = #tpu.pipeline_mode<synchronous>, transform_indices = @transform_7, window_bounds = array<i64: 1, 128>}, {pipeline_mode = #tpu.pipeline_mode<synchronous>, transform_indices = @transform_8, window_bounds = array<i64: 1, 128>}, {transform_indices = @transform_9, window_bounds = array<i64: 8, 128>}]} {
    %c0 = arith.constant 0 : index
    %c0_0 = arith.constant 0 : index
    %0 = vector.load %arg1[%c0, %c0_0] : memref<8x8xf32, #tpu.memory_space<vmem>>, vector<8x8xf32>
    %c0_1 = arith.constant 0 : index
    %c0_2 = arith.constant 0 : index
    %1 = vector.load %arg2[%c0_1, %c0_2] : memref<8x256xf32, #tpu.memory_space<vmem>>, vector<8x256xf32>
    %cst = arith.constant dense<0.000000e+00> : vector<8x256xf32>
    %2 = tpu.matmul %0, %1, %cst {dimension_numbers = #tpu.dot_dimension_numbers<[1], [0], [0], [1], [0, 0, 1, 1], [], []>} : vector<8x8xf32>, vector<8x256xf32>, vector<8x256xf32> -> vector<8x256xf32>
    %c0_3 = arith.constant 0 : index
    %c0_4 = arith.constant 0 : index
    %3 = vector.load %arg3[%c0_3, %c0_4] : memref<1x256xf32, #tpu.memory_space<vmem>>, vector<1x256xf32>
    %4 = vector.broadcast %3 : vector<1x256xf32> to vector<8x256xf32>
    %5 = arith.addf %2, %4 : vector<8x256xf32>
    %cst_5 = arith.constant 0.000000e+00 : f32
    %6 = vector.broadcast %cst_5 : f32 to vector<8x256xf32>
    %7 = arith.maximumf %5, %6 : vector<8x256xf32>
    %c0_6 = arith.constant 0 : index
    %c0_7 = arith.constant 0 : index
    %8 = vector.load %arg4[%c0_6, %c0_7] : memref<256x256xf32, #tpu.memory_space<vmem>>, vector<256x256xf32>
    %cst_8 = arith.constant dense<0.000000e+00> : vector<8x256xf32>
    %9 = tpu.matmul %7, %8, %cst_8 {dimension_numbers = #tpu.dot_dimension_numbers<[1], [0], [0], [1], [0, 0, 1, 1], [], []>} : vector<8x256xf32>, vector<256x256xf32>, vector<8x256xf32> -> vector<8x256xf32>
    %c0_9 = arith.constant 0 : index
    %c0_10 = arith.constant 0 : index
    %10 = vector.load %arg5[%c0_9, %c0_10] : memref<1x256xf32, #tpu.memory_space<vmem>>, vector<1x256xf32>
    %11 = vector.broadcast %10 : vector<1x256xf32> to vector<8x256xf32>
    %12 = arith.addf %9, %11 : vector<8x256xf32>
    %cst_11 = arith.constant 0.000000e+00 : f32
    %13 = vector.broadcast %cst_11 : f32 to vector<8x256xf32>
    %14 = arith.maximumf %12, %13 : vector<8x256xf32>
    %c0_12 = arith.constant 0 : index
    %c0_13 = arith.constant 0 : index
    %15 = vector.load %arg6[%c0_12, %c0_13] : memref<256x128xf32, #tpu.memory_space<vmem>>, vector<256x128xf32>
    %cst_14 = arith.constant dense<0.000000e+00> : vector<8x128xf32>
    %16 = tpu.matmul %14, %15, %cst_14 {dimension_numbers = #tpu.dot_dimension_numbers<[1], [0], [0], [1], [0, 0, 1, 1], [], []>} : vector<8x256xf32>, vector<256x128xf32>, vector<8x128xf32> -> vector<8x128xf32>
    %c0_15 = arith.constant 0 : index
    %c0_16 = arith.constant 0 : index
    %17 = vector.load %arg7[%c0_15, %c0_16] : memref<1x128xf32, #tpu.memory_space<vmem>>, vector<1x128xf32>
    %18 = vector.broadcast %17 : vector<1x128xf32> to vector<8x128xf32>
    %19 = arith.addf %16, %18 : vector<8x128xf32>
    %c0_17 = arith.constant 0 : index
    %c0_18 = arith.constant 0 : index
    %20 = vector.load %arg8[%c0_17, %c0_18] : memref<1x128xf32, #tpu.memory_space<vmem>>, vector<1x128xf32>
    %21 = vector.broadcast %20 : vector<1x128xf32> to vector<8x128xf32>
    %22 = arith.maximumf %19, %21 : vector<8x128xf32>
    %c0_19 = arith.constant 0 : index
    %c0_20 = arith.constant 0 : index
    %23 = vector.load %arg9[%c0_19, %c0_20] : memref<1x128xf32, #tpu.memory_space<vmem>>, vector<1x128xf32>
    %24 = vector.broadcast %23 : vector<1x128xf32> to vector<8x128xf32>
    %25 = arith.minimumf %22, %24 : vector<8x128xf32>
    %c0_21 = arith.constant 0 : index
    %c0_22 = arith.constant 0 : index
    %26 = vector.load %arg10[%c0_21, %c0_22] : memref<8x128xf32, #tpu.memory_space<vmem>>, vector<8x128xf32>
    tpu.vector_store %arg10[%c0_21, %c0_22], %25 {strides = array<i32>} : memref<8x128xf32, #tpu.memory_space<vmem>>, vector<8x128xf32>,
    return
  }
  func.func @transform_0(%arg0: i32) -> (i32, i32) {
    %c0_i32 = arith.constant 0 : i32
    %c0_i32_0 = arith.constant 0 : i32
    return %arg0, %c0_i32 : i32, i32
  }
  func.func @transform_1(%arg0: i32) -> (i32, i32) {
    %c0_i32 = arith.constant 0 : i32
    %c0_i32_0 = arith.constant 0 : i32
    %c0_i32_1 = arith.constant 0 : i32
    return %c0_i32, %c0_i32_0 : i32, i32
  }
  func.func @transform_2(%arg0: i32) -> (i32, i32) {
    %c0_i32 = arith.constant 0 : i32
    %c0_i32_0 = arith.constant 0 : i32
    %c0_i32_1 = arith.constant 0 : i32
    return %c0_i32, %c0_i32_0 : i32, i32
  }
  func.func @transform_3(%arg0: i32) -> (i32, i32) {
    %c0_i32 = arith.constant 0 : i32
    %c0_i32_0 = arith.constant 0 : i32
    %c0_i32_1 = arith.constant 0 : i32
    return %c0_i32, %c0_i32_0 : i32, i32
  }
  func.func @transform_4(%arg0: i32) -> (i32, i32) {
    %c0_i32 = arith.constant 0 : i32
    %c0_i32_0 = arith.constant 0 : i32
    %c0_i32_1 = arith.constant 0 : i32
    return %c0_i32, %c0_i32_0 : i32, i32
  }
  func.func @transform_5(%arg0: i32) -> (i32, i32) {
    %c0_i32 = arith.constant 0 : i32
    %c0_i32_0 = arith.constant 0 : i32
    %c0_i32_1 = arith.constant 0 : i32
    return %c0_i32, %c0_i32_0 : i32, i32
  }
  func.func @transform_6(%arg0: i32) -> (i32, i32) {
    %c0_i32 = arith.constant 0 : i32
    %c0_i32_0 = arith.constant 0 : i32
    %c0_i32_1 = arith.constant 0 : i32
    return %c0_i32, %c0_i32_0 : i32, i32
  }
  func.func @transform_7(%arg0: i32) -> (i32, i32) {
    %c0_i32 = arith.constant 0 : i32
    %c0_i32_0 = arith.constant 0 : i32
    %c0_i32_1 = arith.constant 0 : i32
    return %c0_i32, %c0_i32_0 : i32, i32
  }
  func.func @transform_8(%arg0: i32) -> (i32, i32) {
    %c0_i32 = arith.constant 0 : i32
    %c0_i32_0 = arith.constant 0 : i32
    %c0_i32_1 = arith.constant 0 : i32
    return %c0_i32, %c0_i32_0 : i32, i32
  }
  func.func @transform_9(%arg0: i32) -> (i32, i32) {
    %c0_i32 = arith.constant 0 : i32
    %c0_i32_0 = arith.constant 0 : i32
    return %arg0, %c0_i32 : i32, i32
  }
}

</mosaic_0001>

<llo_original>
// kernel: actor_forward.1
$region0: #{actor_forward.1}
  #allocation0 [shape = 'u32[]', space=smem, size = 0x4, offset = 0x4, fixed_abs, tag = 'smem constant byte address 0x4 - core index']
  #allocation1 [shape = 'u32[144,128]{1,0:T(1,128)}', space=vmem, size = 0x12000, scoped, tag = 'internal scratch']
  %s0 = inlined_call_operand.vmem [shape: f32[8,8], index: 0, kind: input, shape index: {}]
  %s1 = inlined_call_operand.vmem [shape: f32[8,256], index: 1, kind: input, shape index: {}]
  %s2 = inlined_call_operand.vmem [shape: f32[1,256], index: 2, kind: input, shape index: {}]
  %s3 = inlined_call_operand.hbm [shape: f32[256,256], index: 3, kind: input, shape index: {}]
  %s4 = inlined_call_operand.vmem [shape: f32[1,256], index: 4, kind: input, shape index: {}]
  %s5 = inlined_call_operand.hbm [shape: f32[256,128], index: 5, kind: input, shape index: {}]
  %s6 = inlined_call_operand.vmem [shape: f32[1,128], index: 6, kind: input, shape index: {}]
  %s7 = inlined_call_operand.hbm [shape: f32[1,128], index: 7, kind: input, shape index: {}]
  %s8 = inlined_call_operand.hbm [shape: f32[1,128], index: 8, kind: input, shape index: {}]
  %s9 = inlined_call_operand.vmem [shape: f32[8,128], index: 9, kind: output, shape index: {}]
  %s10 = sld [smem:[#allocation0]]
  $region62: #{actor_forward.1} parent=0
    _
  %s12 = ssub.s32 1, %s10
  %s13 = scalar_select 0, %s12, %s10
  $region1: #{actor_forward.1} parent=0
    #allocation2 [shape = 'u8[262144]{0}', space=vmem, size = 0x40000, scoped, tag = 'input window, operand 3, single buffered']
    #allocation3 [shape = 's32[1]{0}', space=sflag, size = 0x4, scoped, tag = 'scoped memory for actor_forward.1']
    #allocation4 [shape = 'u8[131072]{0}', space=vmem, size = 0x20000, scoped, tag = 'input window, operand 5, single buffered']
    #allocation5 [shape = 's32[1]{0}', space=sflag, size = 0x4, scoped, tag = 'scoped memory for actor_forward.1']
    #allocation6 [shape = 'u8[512]{0}', space=vmem, size = 0x400, scoped, tag = 'input window, operand 7, single buffered']
    #allocation7 [shape = 'u8[512]{0}', space=vmem, size = 0x400, scoped, tag = 'input window, operand 8, single buffered']
    #allocation8 [shape = 's32[1]{0}', space=sflag, size = 0x4, scoped, tag = 'scoped memory for actor_forward.1']
    %14 = vsyncpa [#allocation3], 0
    %15 = vsyncpa [#allocation5], 0
    %16 = vsyncpa [#allocation8], 0
    // Predicated region
    $region2: #{actor_forward.1} parent=1 // pred_check
      _
    $region3: #{actor_forward.1} parent=1 // pred_check_branch
      %18 = sbr.rel (0) target = $region5
    $region4: #{actor_forward.1} parent=1 // pred_region
      _
    $region5: #{actor_forward.1} parent=1 // pred_fallthru
      _
    // Predicated region
    $region6: #{actor_forward.1} parent=1 // pred_check
      _
    $region7: #{actor_forward.1} parent=1 // pred_check_branch
      %20 = sbr.rel (0) target = $region9
    $region8: #{actor_forward.1} parent=1 // pred_region
      _
    $region9: #{actor_forward.1} parent=1 // pred_fallthru
      _
    // Predicated region
    $region10: #{actor_forward.1} parent=1 // pred_check
      _
    $region11: #{actor_forward.1} parent=1 // pred_check_branch
      %22 = sbr.rel (0) target = $region13
    $region12: #{actor_forward.1} parent=1 // pred_region
      _
    $region13: #{actor_forward.1} parent=1 // pred_fallthru
      _
    // Predicated region
    $region14: #{actor_forward.1} parent=1 // pred_check
      _
    $region15: #{actor_forward.1} parent=1 // pred_check_branch
      %24 = sbr.rel (0) target = $region17
    $region16: #{actor_forward.1} parent=1 // pred_region
      %s26 = ssub.s32 8192, 8192
      %27 = vsyncadd [#allocation3], %s26
      %s28 = sshll.u32 [#allocation2], 4
      %s29 = int_to_ptr.vmem [resolvable:$true] %s28
      %34 = dma.hbm_to_vmem [thread:$0]  %s3, 8192, %s29, [#allocation3], 256, 256, 16
    $region17: #{actor_forward.1} parent=1 // pred_fallthru
      _
    // Predicated region
    $region18: #{actor_forward.1} parent=1 // pred_check
      _
    $region19: #{actor_forward.1} parent=1 // pred_check_branch
      %36 = sbr.rel (0) target = $region21
    $region20: #{actor_forward.1} parent=1 // pred_region
      _
    $region21: #{actor_forward.1} parent=1 // pred_fallthru
      _
    // Predicated region
    $region22: #{actor_forward.1} parent=1 // pred_check
      _
    $region23: #{actor_forward.1} parent=1 // pred_check_branch
      %38 = sbr.rel (0) target = $region25
    $region24: #{actor_forward.1} parent=1 // pred_region
      %s40 = ssub.s32 4096, 4096
      %41 = vsyncadd [#allocation5], %s40
      %s42 = sshll.u32 [#allocation4], 4
      %s43 = int_to_ptr.vmem [resolvable:$true] %s42
      %48 = dma.hbm_to_vmem [thread:$0]  %s5, 4096, %s43, [#allocation5], 128, 128, 8
    $region25: #{actor_forward.1} parent=1 // pred_fallthru
      _
    // Predicated region
    $region26: #{actor_forward.1} parent=1 // pred_check
      _
    $region27: #{actor_forward.1} parent=1 // pred_check_branch
      %50 = sbr.rel (0) target = $region29
    $region28: #{actor_forward.1} parent=1 // pred_region
      _
    $region29: #{actor_forward.1} parent=1 // pred_fallthru
      _
    // Predicated region
    $region30: #{actor_forward.1} parent=1 // pred_check
      _
    $region31: #{actor_forward.1} parent=1 // pred_check_branch
      %52 = sbr.rel (0) target = $region33
    $region32: #{actor_forward.1} parent=1 // pred_region
      %s54 = ssub.s32 16, 16
      %55 = vsyncadd [#allocation5], %s54
      %s57 = sshll.u32 [#allocation6], 4
      %s58 = int_to_ptr.vmem [resolvable:$true] %s57
      %60 = dma.hbm_to_vmem [thread:$0]  %s7, 16, %s58, [#allocation5]
    $region33: #{actor_forward.1} parent=1 // pred_fallthru
      _
    // Predicated region
    $region34: #{actor_forward.1} parent=1 // pred_check
      _
    $region35: #{actor_forward.1} parent=1 // pred_check_branch
      %62 = sbr.rel (0) target = $region37
    $region36: #{actor_forward.1} parent=1 // pred_region
      %s64 = ssub.s32 16, 16
      %65 = vsyncadd [#allocation8], %s64
      %s67 = sshll.u32 [#allocation7], 4
      %s68 = int_to_ptr.vmem [resolvable:$true] %s67
      %70 = dma.hbm_to_vmem [thread:$0]  %s8, 16, %s68, [#allocation8]
    $region37: #{actor_forward.1} parent=1 // pred_fallthru
      _
    // Predicated region
    $region38: #{actor_forward.1} parent=1 // pred_check
      _
    $region39: #{actor_forward.1} parent=1 // pred_check_branch
      %72 = sbr.rel (0) target = $region41
    $region40: #{actor_forward.1} parent=1 // pred_region
      %73 = dma.done [#allocation3], 8192
    $region41: #{actor_forward.1} parent=1 // pred_fallthru
      _
    // Predicated region
    $region42: #{actor_forward.1} parent=1 // pred_check
      _
    $region43: #{actor_forward.1} parent=1 // pred_check_branch
      %75 = sbr.rel (0) target = $region45
    $region44: #{actor_forward.1} parent=1 // pred_region
      %76 = dma.done [#allocation5], 4096
    $region45: #{actor_forward.1} parent=1 // pred_fallthru
      _
    // Predicated region
    $region46: #{actor_forward.1} parent=1 // pred_check
      _
    $region47: #{actor_forward.1} parent=1 // pred_check_branch
      %78 = sbr.rel (0) target = $region49
    $region48: #{actor_forward.1} parent=1 // pred_region
      %79 = dma.done [#allocation5], 16
    $region49: #{actor_forward.1} parent=1 // pred_fallthru
      _
    // Predicated region
    $region50: #{actor_forward.1} parent=1 // pred_check
      _
    $region51: #{actor_forward.1} parent=1 // pred_check_branch
      %81 = sbr.rel (0) target = $region53
    $region52: #{actor_forward.1} parent=1 // pred_region
      %82 = dma.done [#allocation8], 16
    $region53: #{actor_forward.1} parent=1 // pred_fallthru
      _
    %v83 = vld [vmem:[%s0] sm:$0xff]
    %v84 = vld [vmem:[%s1] sm:$0xff]
    %v85 = vld [vmem:[%s1 + $0x8] sm:$0xff]
    %v86 = vld [vmem:[%s2] sm:$0x3]
    %v88 = vlaneseq
    %v89 = vshrl.u32 %v88, 7
    %v90 = vsub.s32 0, %v89
    %v91 = vrot.slane %v86, %v90
    %v92 = vlaneseq
    %v93 = vshrl.u32 %v92, 7
    %v94 = vsub.s32 1, %v93
    %v95 = vrot.slane %v86, %v94
    %vm98 = vcmask 64512
    %v100 = vsel %vm98, %v83, 0
    %102 = vmatprep.subr.mxu0 0.0
    %103 = vmatpush1.msra.mxu0 0.0
    %104 = vmatprep.subr.mxu0 0.0
    %105 = vmatpush1.msra.mxu0 0.0
    %106 = vmatprep.subr.mxu0 0.0
    %107 = vmatpush1.msra.mxu0 0.0
    %108 = vmatprep.subr.mxu0 0.0
    %109 = vmatpush1.msra.mxu0 0.0
    %110 = vmatprep.subr.mxu0 0.0
    %111 = vmatpush1.msra.mxu0 0.0
    %112 = vmatprep.subr.mxu0 0.0
    %113 = vmatpush1.msra.mxu0 0.0
    %114 = vmatprep.subr.mxu0 0.0
    %115 = vmatpush1.msra.mxu0 0.0
    %116 = vmatprep.subr.mxu0 0.0
    %117 = vmatpush1.msra.mxu0 0.0
    %118 = vmatprep.subr.mxu0 0.0
    %119 = vmatpush1.msra.mxu0 0.0
    %120 = vmatprep.subr.mxu0 0.0
    %121 = vmatpush1.msra.mxu0 0.0
    %122 = vmatprep.subr.mxu0 0.0
    %123 = vmatpush1.msra.mxu0 0.0
    %124 = vmatprep.subr.mxu0 0.0
    %125 = vmatpush1.msra.mxu0 0.0
    %126 = vmatprep.subr.mxu0 0.0
    %127 = vmatpush1.msra.mxu0 0.0
    %128 = vmatprep.subr.mxu0 0.0
    %129 = vmatpush1.msra.mxu0 0.0
    %130 = vmatprep.subr.mxu0 0.0
    %131 = vmatpush1.msra.mxu0 0.0
    %132 = vmatprep.subr.mxu0 %v85
    %133 = vmatpush1.msra.mxu0 %v84
    %134 = vmatprep.subr.mxu0 0.0
    %135 = vmatpush2.msra.mxu0 0.0
    %136 = vmatprep.subr.mxu0 0.0
    %137 = vmatpush2.msra.mxu0 0.0
    %138 = vmatprep.subr.mxu0 0.0
    %139 = vmatpush2.msra.mxu0 0.0
    %140 = vmatprep.subr.mxu0 0.0
    %141 = vmatpush2.msra.mxu0 0.0
    %142 = vmatprep.subr.mxu0 0.0
    %143 = vmatpush2.msra.mxu0 0.0
    %144 = vmatprep.subr.mxu0 0.0
    %145 = vmatpush2.msra.mxu0 0.0
    %146 = vmatprep.subr.mxu0 0.0
    %147 = vmatpush2.msra.mxu0 0.0
    %148 = vmatprep.subr.mxu0 0.0
    %149 = vmatpush2.msra.mxu0 0.0
    %150 = vmatprep.subr.mxu0 0.0
    %151 = vmatpush2.msra.mxu0 0.0
    %152 = vmatprep.subr.mxu0 0.0
    %153 = vmatpush2.msra.mxu0 0.0
    %154 = vmatprep.subr.mxu0 0.0
    %155 = vmatpush2.msra.mxu0 0.0
    %156 = vmatprep.subr.mxu0 0.0
    %157 = vmatpush2.msra.mxu0 0.0
    %158 = vmatprep.subr.mxu0 0.0
    %159 = vmatpush2.msra.mxu0 0.0
    %160 = vmatprep.subr.mxu0 0.0
    %161 = vmatpush2.msra.mxu0 0.0
    %162 = vmatprep.subr.mxu0 0.0
    %163 = vmatpush2.msra.mxu0 0.0
    %164 = vmatprep.subr.mxu0 0.0
    %165 = vmatpush2.msra.mxu0 0.0
    %166 = vmatprep.mubr.f32.mxu0 0.0
    %167 = vmatmul.mubr.f32.gmra.mxu0 %v100
    %v168 = vpop.f32.mrf.mxu0
    %v169 = vadd.f32 %v91, %v168
    %v170 = vpop.f32.mrf.mxu0
    %v171 = vadd.f32 %v95, %v170
    %172 = vdwg.mxu0
    %v173 = vmax.f32 %v169, 0.0
    %v174 = vmax.f32 %v171, 0.0
    %v175 = vld [vmem:[#allocation2] sm:$0xff]
    %v176 = vld [vmem:[#allocation2 + $0x8] sm:$0xff]
    %v177 = vld [vmem:[#allocation2 + $0x10] sm:$0xff]
    %v178 = vld [vmem:[#allocation2 + $0x18] sm:$0xff]
    %v179 = vld [vmem:[#allocation2 + $0x20] sm:$0xff]
    %v180 = vld [vmem:[#allocation2 + $0x28] sm:$0xff]
    %v181 = vld [vmem:[#allocation2 + $0x30] sm:$0xff]
    %v182 = vld [vmem:[#allocation2 + $0x38] sm:$0xff]
    %v183 = vld [vmem:[#allocation2 + $0x40] sm:$0xff]
    %v184 = vld [vmem:[#allocation2 + $0x48] sm:$0xff]
    %v185 = vld [vmem:[#allocation2 + $0x50] sm:$0xff]
    %v186 = vld [vmem:[#allocation2 + $0x58] sm:$0xff]
    %v187 = vld [vmem:[#allocation2 + $0x60] sm:$0xff]
    %v188 = vld [vmem:[#allocation2 + $0x68] sm:$0xff]
    %v189 = vld [vmem:[#allocation2 + $0x70] sm:$0xff]
    %v190 = vld [vmem:[#allocation2 + $0x78] sm:$0xff]
    %v191 = vld [vmem:[#allocation2 + $0x80] sm:$0xff]
    %v192 = vld [vmem:[#allocation2 + $0x88] sm:$0xff]
    %v193 = vld [vmem:[#allocation2 + $0x90] sm:$0xff]
    %v194 = vld [vmem:[#allocation2 + $0x98] sm:$0xff]
    %v195 = vld [vmem:[#allocation2 + $0xa0] sm:$0xff]
    %v196 = vld [vmem:[#allocation2 + $0xa8] sm:$0xff]
    %v197 = vld [vmem:[#allocation2 + $0xb0] sm:$0xff]
    %v198 = vld [vmem:[#allocation2 + $0xb8] sm:$0xff]
    %v199 = vld [vmem:[#allocation2 + $0xc0] sm:$0xff]
    %v200 = vld [vmem:[#allocation2 + $0xc8] sm:$0xff]
    %v201 = vld [vmem:[#allocation2 + $0xd0] sm:$0xff]
    %v202 = vld [vmem:[#allocation2 + $0xd8] sm:$0xff]
    %v203 = vld [vmem:[#allocation2 + $0xe0] sm:$0xff]
    %v204 = vld [vmem:[#allocation2 + $0xe8] sm:$0xff]
    %v205 = vld [vmem:[#allocation2 + $0xf0] sm:$0xff]
    %v206 = vld [vmem:[#allocation2 + $0xf8] sm:$0xff]
    %v207 = vld [vmem:[#allocation2 + $0x100] sm:$0xff]
    %v208 = vld [vmem:[#allocation2 + $0x108] sm:$0xff]
    %v209 = vld [vmem:[#allocation2 + $0x110] sm:$0xff]
    %v210 = vld [vmem:[#allocation2 + $0x118] sm:$0xff]
    %v211 = vld [vmem:[#allocation2 + $0x120] sm:$0xff]
    %v212 = vld [vmem:[#allocation2 + $0x128] sm:$0xff]
    %v213 = vld [vmem:[#allocation2 + $0x130] sm:$0xff]
    %v214 = vld [vmem:[#allocation2 + $0x138] sm:$0xff]
    %v215 = vld [vmem:[#allocation2 + $0x140] sm:$0xff]
    %v216 = vld [vmem:[#allocation2 + $0x148] sm:$0xff]
    %v217 = vld [vmem:[#allocation2 + $0x150] sm:$0xff]
    %v218 = vld [vmem:[#allocation2 + $0x158] sm:$0xff]
    %v219 = vld [vmem:[#allocation2 + $0x160] sm:$0xff]
    %v220 = vld [vmem:[#allocation2 + $0x168] sm:$0xff]
    %v221 = vld [vmem:[#allocation2 + $0x170] sm:$0xff]
    %v222 = vld [vmem:[#allocation2 + $0x178] sm:$0xff]
    %v223 = vld [vmem:[#allocation2 + $0x180] sm:$0xff]
    %v224 = vld [vmem:[#allocation2 + $0x188] sm:$0xff]
    %v225 = vld [vmem:[#allocation2 + $0x190] sm:$0xff]
    %v226 = vld [vmem:[#allocation2 + $0x198] sm:$0xff]
    %v227 = vld [vmem:[#allocation2 + $0x1a0] sm:$0xff]
    %v228 = vld [vmem:[#allocation2 + $0x1a8] sm:$0xff]
    %v229 = vld [vmem:[#allocation2 + $0x1b0] sm:$0xff]
    %v230 = vld [vmem:[#allocation2 + $0x1b8] sm:$0xff]
    %v231 = vld [vmem:[#allocation2 + $0x1c0] sm:$0xff]
    %v232 = vld [vmem:[#allocation2 + $0x1c8] sm:$0xff]
    %v233 = vld [vmem:[#allocation2 + $0x1d0] sm:$0xff]
    %v234 = vld [vmem:[#allocation2 + $0x1d8] sm:$0xff]
    %v235 = vld [vmem:[#allocation2 + $0x1e0] sm:$0xff]
    %v236 = vld [vmem:[#allocation2 + $0x1e8] sm:$0xff]
    %v237 = vld [vmem:[#allocation2 + $0x1f0] sm:$0xff]
    %v238 = vld [vmem:[#allocation2 + $0x1f8] sm:$0xff]
    %v239 = vld [vmem:[%s4] sm:$0x3]
    %v241 = vlaneseq
    %v242 = vshrl.u32 %v241, 7
    %v243 = vsub.s32 0, %v242
    %v244 = vrot.slane %v239, %v243
    %v245 = vlaneseq
    %v246 = vshrl.u32 %v245, 7
    %v247 = vsub.s32 1, %v246
    %v248 = vrot.slane %v239, %v247
    %251 = vmatprep.subr.mxu0 %v206
    %252 = vmatpush1.msra.mxu0 %v205
    %253 = vmatprep.subr.mxu0 %v204
    %254 = vmatpush1.msra.mxu0 %v203
    %255 = vmatprep.subr.mxu0 %v202
    %256 = vmatpush1.msra.mxu0 %v201
    %257 = vmatprep.subr.mxu0 %v200
    %258 = vmatpush1.msra.mxu0 %v199
    %259 = vmatprep.subr.mxu0 %v198
    %260 = vmatpush1.msra.mxu0 %v197
    %261 = vmatprep.subr.mxu0 %v196
    %262 = vmatpush1.msra.mxu0 %v195
    %263 = vmatprep.subr.mxu0 %v194
    %264 = vmatpush1.msra.mxu0 %v193
    %265 = vmatprep.subr.mxu0 %v192
    %266 = vmatpush1.msra.mxu0 %v191
    %267 = vmatprep.subr.mxu0 %v190
    %268 = vmatpush1.msra.mxu0 %v189
    %269 = vmatprep.subr.mxu0 %v188
    %270 = vmatpush1.msra.mxu0 %v187
    %271 = vmatprep.subr.mxu0 %v186
    %272 = vmatpush1.msra.mxu0 %v185
    %273 = vmatprep.subr.mxu0 %v184
    %274 = vmatpush1.msra.mxu0 %v183
    %275 = vmatprep.subr.mxu0 %v182
    %276 = vmatpush1.msra.mxu0 %v181
    %277 = vmatprep.subr.mxu0 %v180
    %278 = vmatpush1.msra.mxu0 %v179
    %279 = vmatprep.subr.mxu0 %v178
    %280 = vmatpush1.msra.mxu0 %v177
    %281 = vmatprep.subr.mxu0 %v176
    %282 = vmatpush1.msra.mxu0 %v175
    %283 = vmatprep.subr.mxu0 %v238
    %284 = vmatpush2.msra.mxu0 %v237
    %285 = vmatprep.subr.mxu0 %v236
    %286 = vmatpush2.msra.mxu0 %v235
    %287 = vmatprep.subr.mxu0 %v234
    %288 = vmatpush2.msra.mxu0 %v233
    %289 = vmatprep.subr.mxu0 %v232
    %290 = vmatpush2.msra.mxu0 %v231
    %291 = vmatprep.subr.mxu0 %v230
    %292 = vmatpush2.msra.mxu0 %v229
    %293 = vmatprep.subr.mxu0 %v228
    %294 = vmatpush2.msra.mxu0 %v227
    %295 = vmatprep.subr.mxu0 %v226
    %296 = vmatpush2.msra.mxu0 %v225
    %297 = vmatprep.subr.mxu0 %v224
    %298 = vmatpush2.msra.mxu0 %v223
    %299 = vmatprep.subr.mxu0 %v222
    %300 = vmatpush2.msra.mxu0 %v221
    %301 = vmatprep.subr.mxu0 %v220
    %302 = vmatpush2.msra.mxu0 %v219
    %303 = vmatprep.subr.mxu0 %v218
    %304 = vmatpush2.msra.mxu0 %v217
    %305 = vmatprep.subr.mxu0 %v216
    %306 = vmatpush2.msra.mxu0 %v215
    %307 = vmatprep.subr.mxu0 %v214
    %308 = vmatpush2.msra.mxu0 %v213
    %309 = vmatprep.subr.mxu0 %v212
    %310 = vmatpush2.msra.mxu0 %v211
    %311 = vmatprep.subr.mxu0 %v210
    %312 = vmatpush2.msra.mxu0 %v209
    %313 = vmatprep.subr.mxu0 %v208
    %314 = vmatpush2.msra.mxu0 %v207
    %315 = vmatprep.mubr.f32.mxu0 %v174
    %316 = vmatmul.mubr.f32.gmra.mxu0 %v173
    %v317 = vpop.f32.mrf.mxu0
    %v318 = vadd.f32 %v244, %v317
    %v319 = vpop.f32.mrf.mxu0
    %v320 = vadd.f32 %v248, %v319
    %321 = vdwg.mxu0
    %v322 = vmax.f32 %v318, 0.0
    %v323 = vmax.f32 %v320, 0.0
    %v324 = vld [vmem:[#allocation4] sm:$0xff]
    %v325 = vld [vmem:[#allocation4 + $0x8] sm:$0xff]
    %v326 = vld [vmem:[#allocation4 + $0x10] sm:$0xff]
    %v327 = vld [vmem:[#allocation4 + $0x18] sm:$0xff]
    %v328 = vld [vmem:[#allocation4 + $0x20] sm:$0xff]
    %v329 = vld [vmem:[#allocation4 + $0x28] sm:$0xff]
    %v330 = vld [vmem:[#allocation4 + $0x30] sm:$0xff]
    %v331 = vld [vmem:[#allocation4 + $0x38] sm:$0xff]
    %v332 = vld [vmem:[#allocation4 + $0x40] sm:$0xff]
    %v333 = vld [vmem:[#allocation4 + $0x48] sm:$0xff]
    %v334 = vld [vmem:[#allocation4 + $0x50] sm:$0xff]
    %v335 = vld [vmem:[#allocation4 + $0x58] sm:$0xff]
    %v336 = vld [vmem:[#allocation4 + $0x60] sm:$0xff]
    %v337 = vld [vmem:[#allocation4 + $0x68] sm:$0xff]
    %v338 = vld [vmem:[#allocation4 + $0x70] sm:$0xff]
    %v339 = vld [vmem:[#allocation4 + $0x78] sm:$0xff]
    %v340 = vld [vmem:[#allocation4 + $0x80] sm:$0xff]
    %v341 = vld [vmem:[#allocation4 + $0x88] sm:$0xff]
    %v342 = vld [vmem:[#allocation4 + $0x90] sm:$0xff]
    %v343 = vld [vmem:[#allocation4 + $0x98] sm:$0xff]
    %v344 = vld [vmem:[#allocation4 + $0xa0] sm:$0xff]
    %v345 = vld [vmem:[#allocation4 + $0xa8] sm:$0xff]
    %v346 = vld [vmem:[#allocation4 + $0xb0] sm:$0xff]
    %v347 = vld [vmem:[#allocation4 + $0xb8] sm:$0xff]
    %v348 = vld [vmem:[#allocation4 + $0xc0] sm:$0xff]
    %v349 = vld [vmem:[#allocation4 + $0xc8] sm:$0xff]
    %v350 = vld [vmem:[#allocation4 + $0xd0] sm:$0xff]
    %v351 = vld [vmem:[#allocation4 + $0xd8] sm:$0xff]
    %v352 = vld [vmem:[#allocation4 + $0xe0] sm:$0xff]
    %v353 = vld [vmem:[#allocation4 + $0xe8] sm:$0xff]
    %v354 = vld [vmem:[#allocation4 + $0xf0] sm:$0xff]
    %v355 = vld [vmem:[#allocation4 + $0xf8] sm:$0xff]
    %v356 = vld [vmem:[%s6] sm:$0x1]
    %v358 = vlaneseq
    %v359 = vshrl.u32 %v358, 7
    %v360 = vsub.s32 0, %v359
    %v361 = vrot.slane %v356, %v360
    %363 = vmatprep.subr.mxu0 0.0
    %364 = vmatpush1.msra.mxu0 %v339
    %365 = vmatprep.subr.mxu0 0.0
    %366 = vmatpush1.msra.mxu0 %v338
    %367 = vmatprep.subr.mxu0 0.0
    %368 = vmatpush1.msra.mxu0 %v337
    %369 = vmatprep.subr.mxu0 0.0
    %370 = vmatpush1.msra.mxu0 %v336
    %371 = vmatprep.subr.mxu0 0.0
    %372 = vmatpush1.msra.mxu0 %v335
    %373 = vmatprep.subr.mxu0 0.0
    %374 = vmatpush1.msra.mxu0 %v334
    %375 = vmatprep.subr.mxu0 0.0
    %376 = vmatpush1.msra.mxu0 %v333
    %377 = vmatprep.subr.mxu0 0.0
    %378 = vmatpush1.msra.mxu0 %v332
    %379 = vmatprep.subr.mxu0 0.0
    %380 = vmatpush1.msra.mxu0 %v331
    %381 = vmatprep.subr.mxu0 0.0
    %382 = vmatpush1.msra.mxu0 %v330
    %383 = vmatprep.subr.mxu0 0.0
    %384 = vmatpush1.msra.mxu0 %v329
    %385 = vmatprep.subr.mxu0 0.0
    %386 = vmatpush1.msra.mxu0 %v328
    %387 = vmatprep.subr.mxu0 0.0
    %388 = vmatpush1.msra.mxu0 %v327
    %389 = vmatprep.subr.mxu0 0.0
    %390 = vmatpush1.msra.mxu0 %v326
    %391 = vmatprep.subr.mxu0 0.0
    %392 = vmatpush1.msra.mxu0 %v325
    %393 = vmatprep.subr.mxu0 0.0
    %394 = vmatpush1.msra.mxu0 %v324
    %395 = vmatprep.subr.mxu0 0.0
    %396 = vmatpush2.msra.mxu0 %v355
    %397 = vmatprep.subr.mxu0 0.0
    %398 = vmatpush2.msra.mxu0 %v354
    %399 = vmatprep.subr.mxu0 0.0
    %400 = vmatpush2.msra.mxu0 %v353
    %401 = vmatprep.subr.mxu0 0.0
    %402 = vmatpush2.msra.mxu0 %v352
    %403 = vmatprep.subr.mxu0 0.0
    %404 = vmatpush2.msra.mxu0 %v351
    %405 = vmatprep.subr.mxu0 0.0
    %406 = vmatpush2.msra.mxu0 %v350
    %407 = vmatprep.subr.mxu0 0.0
    %408 = vmatpush2.msra.mxu0 %v349
    %409 = vmatprep.subr.mxu0 0.0
    %410 = vmatpush2.msra.mxu0 %v348
    %411 = vmatprep.subr.mxu0 0.0
    %412 = vmatpush2.msra.mxu0 %v347
    %413 = vmatprep.subr.mxu0 0.0
    %414 = vmatpush2.msra.mxu0 %v346
    %415 = vmatprep.subr.mxu0 0.0
    %416 = vmatpush2.msra.mxu0 %v345
    %417 = vmatprep.subr.mxu0 0.0
    %418 = vmatpush2.msra.mxu0 %v344
    %419 = vmatprep.subr.mxu0 0.0
    %420 = vmatpush2.msra.mxu0 %v343
    %421 = vmatprep.subr.mxu0 0.0
    %422 = vmatpush2.msra.mxu0 %v342
    %423 = vmatprep.subr.mxu0 0.0
    %424 = vmatpush2.msra.mxu0 %v341
    %425 = vmatprep.subr.mxu0 0.0
    %426 = vmatpush2.msra.mxu0 %v340
    %427 = vmatprep.mubr.f32.mxu0 %v323
    %428 = vmatmul.mubr.f32.gmra.mxu0 %v322
    %v429 = vpop.f32.mrf.mxu0
    %v430 = vadd.f32 %v361, %v429
    %v431 = vpop.f32.mrf.mxu0
    %432 = vdwg.mxu0
    %v433 = vld [vmem:[#allocation6] sm:$0x1]
    %v435 = vlaneseq
    %v436 = vshrl.u32 %v435, 7
    %v437 = vsub.s32 0, %v436
    %v438 = vrot.slane %v433, %v437
    %v440 = vmax.f32 %v430, %v438
    %v441 = vld [vmem:[#allocation7] sm:$0x1]
    %v443 = vlaneseq
    %v444 = vshrl.u32 %v443, 7
    %v445 = vsub.s32 0, %v444
    %v446 = vrot.slane %v441, %v445
    %v448 = vmin.f32 %v440, %v446
    %449 = vst [vmem:[%s9] sm:$0xff] %v448
    // Predicated region
    $region54: #{actor_forward.1} parent=1 // pred_check
      _
    $region55: #{actor_forward.1} parent=1 // pred_check_branch
      %451 = sbr.rel (0) target = $region57
    $region56: #{actor_forward.1} parent=1 // pred_region
      _
    $region57: #{actor_forward.1} parent=1 // pred_fallthru
      _
    // Predicated region
    $region58: #{actor_forward.1} parent=1 // pred_check
      _
    $region59: #{actor_forward.1} parent=1 // pred_check_branch
      %453 = sbr.rel (0) target = $region61
    $region60: #{actor_forward.1} parent=1 // pred_region
      _
    $region61: #{actor_forward.1} parent=1 // pred_fallthru
      _
    %454 = vsyncpa [#allocation3], 1
    %455 = vsyncpa [#allocation5], 1
    %456 = vsyncpa [#allocation8], 1

</llo_original>
